<compile_context>
chip_gen: v5e
topology: v5e:2x2
jax: 0.10.0
libtpu: 0.0.40
codegen_flags: <defaults>
</compile_context>

<pallas_src>
import functools
import math

import jax
import jax.numpy as jnp
from jax import lax
from jax.experimental import pallas as pl
from jax.experimental.pallas import tpu as pltpu


def _cdiv(a, b):
    return -(-a // b)


def _graph_attn_bias_kernel(ab_ref, edge_ref, table_ref, out_ref, *,
                            D, pack_bits, counts_dtype):
    # ab_ref:    [TB, 1, TQ]  f32   flattened attention bias (lane-dense)
    # edge_ref:  [TB, 1, TQ]  i32   packed edge indices (pack_bits-bit fields)
    #            or [TB, D, TQ] i32 when pack_bits == 0; sentinel fields never
    #            match the one-hot (graph-token row/col + lane padding -> 0).
    # table_ref: [H, E]       bf16  transposed edge table, pre-scaled by 1/D
    # out_ref:   [TB, H, TQ]  f32
    TB = ab_ref.shape[0]
    TQ = ab_ref.shape[-1]
    H, E = table_ref.shape

    table = table_ref[...]                                   # [H, E] bf16
    iota_e = lax.broadcasted_iota(jnp.int32, (E, TQ), 0)     # [E, TQ]
    ab = ab_ref[...]                                         # [TB, 1, TQ]
    edge = edge_ref[...]                                     # packed or unpacked
    mask = (1 << pack_bits) - 1 if pack_bits else 0

    for b in range(TB):                                      # TB small & static
        # One-hot counts over the edge vocabulary, [E, TQ] (E sublanes,
        # TQ lane-dense). Counts <= D are exact in bf16.
        counts = jnp.zeros((E, TQ), counts_dtype)
        for d in range(D):                                   # D small & static
            if pack_bits:
                fld = (edge[b] >> (d * pack_bits)) & mask    # [1, TQ]
            else:
                fld = edge[b, d:d + 1, :]                    # [1, TQ]
            counts = counts + (iota_e == fld).astype(counts_dtype)

        # [H,E] x [E,TQ] on the MXU, f32 accumulation. The 1/D of mean(-2) is
        # already folded into `table` in the wrapper.
        edge_hq = jnp.dot(table, counts.astype(jnp.bfloat16),
                          preferred_element_type=jnp.float32)  # [H, TQ]

        # out = repeat(ab, H) + padded_edge_mean + ab  ==  2*ab + edge_hq.
        # Edge bias is already zero on graph-token/pad columns (sentinels), so
        # one lane-dense full-tile store per batch row covers everything.
        out_ref[b] = 2.0 * ab[b] + edge_hq                   # [H, TQ]


def _choose_tiling(B, Q, H, E, counts_bytes, edge_bytes_per_q, *,
                   max_q_tile=8192, vmem_budget=16 << 20):
    """Pick (TB, TQ, n_q) so per-step VMEM stays under `vmem_budget`."""
    lane = 128
    q128 = _cdiv(Q, lane) * lane

    def step_bytes(tb, tq):
        io = 2 * tb * tq * (4 + edge_bytes_per_q + 4 * H)    # dbl-buffered I/O
        tmp = 2 * E * tq * (counts_bytes + 2)                # counts + bf16 copy
        return io + tmp

    tq = max(lane, (min(max_q_tile, q128) // lane) * lane)
    while tq > lane and step_bytes(1, tq) > vmem_budget:
        tq = max(lane, ((tq // 2) // lane) * lane)

    n_q = _cdiv(Q, tq)
    tb = 1
    for cand in range(B, 0, -1):                             # prefer big TB
        if B % cand:
            continue
        if step_bytes(cand, tq) > vmem_budget:
            continue
        # Keep >=2 parallel grid steps when possible (v7x has 2 TensorCores).
        if B * n_q >= 2 and (B // cand) * n_q < 2:
            continue
        tb = cand
        break
    return tb, tq, n_q


def graph_attn_bias(attn_bias, edge_data, edge_table, *,
                    max_q_tile=8192, vmem_budget_bytes=16 << 20):
    """attn_bias: [B, S, S] f32; edge_data: [B, N, N, D] int; edge_table: [E, H]."""
    B, S, _ = attn_bias.shape
    _, N, _, D = edge_data.shape
    E, H = edge_table.shape
    assert S == N + 1
    Q = S * S

    # bf16 counts are exact for counts <= D; v5e has no bf16 VALU -> keep f32.
    try:
        kind = jax.devices()[0].device_kind.lower()
    except Exception:
        kind = ""
    counts_dtype = jnp.float32 if ("v5" in kind or D > 256) else jnp.bfloat16

    # Pack the D edge indices into one int32 word (bits-wide fields) when they
    # fit: edge HBM traffic drops from 4*D to 4 bytes per (i, j) position.
    bits = 32 // D if D > 0 else 0
    pack = bits > 0 and E <= (1 << bits) - 1
    sentinel = (1 << bits) - 1 if pack else -1               # never in [0, E)

    tb, tq, n_q = _choose_tiling(
        B, Q, H, E,
        counts_bytes=jnp.dtype(counts_dtype).itemsize,
        edge_bytes_per_q=4 if pack else 4 * D,
        max_q_tile=max_q_tile, vmem_budget=vmem_budget_bytes)
    q_pad = n_q * tq

    # Flatten attention bias to [B, 1, Qp] (lane-dense, zero lane padding).
    ab = attn_bias.astype(jnp.float32).reshape(B, 1, Q)
    ab = jnp.pad(ab, ((0, 0), (0, 0), (0, q_pad - Q)))

    # Pad edge indices with the graph-token row/col using the sentinel, then
    # flatten the (i, j) pairs onto the lane axis.
    edge = jnp.pad(edge_data.astype(jnp.int32),
                   ((0, 0), (1, 0), (1, 0), (0, 0)), constant_values=sentinel)
    edge = edge.reshape(B, Q, D)
    if pack:
        packed = jnp.zeros((B, Q), jnp.uint32)
        for d in range(D):
            packed = packed | (edge[..., d].astype(jnp.uint32) << (d * bits))
        edge_arr = lax.bitcast_convert_type(packed, jnp.int32).reshape(B, 1, Q)
        # -1 lane padding == all fields set to the sentinel.
        edge_arr = jnp.pad(edge_arr, ((0, 0), (0, 0), (0, q_pad - Q)),
                           constant_values=-1)
        edge_spec = pl.BlockSpec((tb, 1, tq), lambda g, qi: (g, 0, qi))
    else:
        edge_arr = jnp.pad(edge.transpose(0, 2, 1),          # [B, D, Q]
                           ((0, 0), (0, 0), (0, q_pad - Q)),
                           constant_values=-1)
        edge_spec = pl.BlockSpec((tb, D, tq), lambda g, qi: (g, 0, qi))

    # 1/D (the mean over hops) folded into the tiny resident [H, E] table;
    # pre-cast to bf16 once in the wrapper instead of every grid step.
    table_t = (edge_table.astype(jnp.float32).T / D).astype(jnp.bfloat16)

    kernel = functools.partial(_graph_attn_bias_kernel, D=D,
                               pack_bits=bits if pack else 0,
                               counts_dtype=counts_dtype)

    out = pl.pallas_call(
        kernel,
        out_shape=jax.ShapeDtypeStruct((B, H, q_pad), jnp.float32),
        grid=(B // tb, n_q),
        in_specs=[
            pl.BlockSpec((tb, 1, tq), lambda g, qi: (g, 0, qi)),
            edge_spec,
            pl.BlockSpec((H, E), lambda g, qi: (0, 0)),
        ],
        out_specs=pl.BlockSpec((tb, H, tq), lambda g, qi: (g, 0, qi)),
        compiler_params=pltpu.CompilerParams(
            dimension_semantics=("parallel", "parallel"),
            vmem_limit_bytes=32 << 20),
    )(ab, edge_arr, table_t)

    return out[:, :, :Q].reshape(B, H, S, S)


def reference(attn_bias, edge_data, edge_table):
    """Pure-JAX (f32) re-implementation of the PyTorch forward."""
    H = edge_table.shape[1]
    emb = edge_table[edge_data]                            # [B, N, N, D, H]
    edge_input = emb.mean(axis=-2)                         # [B, N, N, H]
    edge_input = jnp.transpose(edge_input, (0, 3, 1, 2))   # [B, H, N, N]
    gab = jnp.repeat(attn_bias[:, None], H, axis=1)        # [B, H, S, S]
    gab = gab.at[:, :, 1:, 1:].add(edge_input)
    gab = gab + attn_bias[:, None]
    return gab


if __name__ == "__main__":
    num_heads = 8
    num_edges = 16
    n_layers = 4

    B, N, D = 2, 8, 3
    S = N + 1

    key = jax.random.PRNGKey(0)
    k1, k2, k3, k4, k5 = jax.random.split(key, 5)

    # self.edge_encoder ~ nn.Embedding(num_edges, num_heads, padding_idx=0)
    edge_table = 0.02 * jax.random.normal(k1, (num_edges, num_heads), jnp.float32)
    edge_table = edge_table.at[0].set(0.0)  # padding_idx=0

    # declared-but-unused parameters (kept only for fidelity with __init__)
    edge_bias_encoder_w = (0.02 * jax.random.normal(
        k2, (1, num_heads), jnp.float32)).at[0].set(0.0)
    graph_token_virtual_distance_w = 0.02 * jax.random.normal(
        k3, (1, num_heads), jnp.float32)

    attn_bias = jax.random.normal(k4, (B, S, S), jnp.float32)
    edge_data = jax.random.randint(k5, (B, N, N, D), 0, num_edges, jnp.int32)

    out = graph_attn_bias(attn_bias, edge_data, edge_table)
    out = jax.block_until_ready(out)

    ref = reference(attn_bias, edge_data, edge_table)
    assert out.shape == (B, num_heads, S, S)
    # bf16 MXU path only affects the O(0.02)-magnitude edge term (table
    # rounding <= ~2e-4 abs); the dominant 2*attn_bias term is exact f32.
    assert jnp.allclose(out, ref, atol=1e-3, rtol=1e-3), "mismatch vs reference"

    print("KERNEL_OK")
</pallas_src>

<mosaic_0001>
module attributes {stable_mosaic.version = 11 : i64} {
  func.func @_graph_attn_bias_kernel(%arg0: i32, %arg1: i32, %arg2: memref<1x1x128xf32, #tpu.memory_space<vmem>>, %arg3: memref<1x1x128xi32, #tpu.memory_space<vmem>>, %arg4: memref<8x16xbf16, #tpu.memory_space<vmem>>, %arg5: memref<1x8x128xf32, #tpu.memory_space<vmem>>) attributes {dimension_semantics = [#tpu.dimension_semantics<parallel>, #tpu.dimension_semantics<parallel>], iteration_bounds = array<i64: 2, 1>, scalar_prefetch = 0 : i64, scratch_operands = 0 : i64, tpu.core_type = #tpu.core_type<tc>, window_params = [{transform_indices = @transform_0, window_bounds = array<i64: 1, 1, 128>}, {transform_indices = @transform_1, window_bounds = array<i64: 1, 1, 128>}, {pipeline_mode = #tpu.pipeline_mode<synchronous>, transform_indices = @transform_2, window_bounds = array<i64: 8, 16>}, {transform_indices = @transform_3, window_bounds = array<i64: 1, 8, 128>}]} {
    %c0 = arith.constant 0 : index
    %c0_0 = arith.constant 0 : index
    %0 = vector.load %arg4[%c0, %c0_0] : memref<8x16xbf16, #tpu.memory_space<vmem>>, vector<8x16xbf16>
    %1 = tpu.iota {dimensions = array<i32: 0>} : vector<16x128xi32>
    %c0_1 = arith.constant 0 : index
    %c0_2 = arith.constant 0 : index
    %c0_3 = arith.constant 0 : index
    %2 = vector.load %arg2[%c0_1, %c0_2, %c0_3] : memref<1x1x128xf32, #tpu.memory_space<vmem>>, vector<1x1x128xf32>
    %c0_4 = arith.constant 0 : index
    %c0_5 = arith.constant 0 : index
    %c0_6 = arith.constant 0 : index
    %3 = vector.load %arg3[%c0_4, %c0_5, %c0_6] : memref<1x1x128xi32, #tpu.memory_space<vmem>>, vector<1x1x128xi32>
    %cst = arith.constant 0.000000e+00 : bf16
    %4 = vector.broadcast %cst : bf16 to vector<16x128xbf16>
    %5 = vector.shape_cast %3 : vector<1x1x128xi32> to vector<1x128xi32>
    %c0_i32 = arith.constant 0 : i32
    %6 = vector.broadcast %c0_i32 : i32 to vector<1x128xi32>
    %7 = arith.shrsi %5, %6 : vector<1x128xi32>
    %c1023_i32 = arith.constant 1023 : i32
    %8 = vector.broadcast %c1023_i32 : i32 to vector<1x128xi32>
    %9 = arith.andi %7, %8 : vector<1x128xi32>
    %10 = vector.broadcast %9 : vector<1x128xi32> to vector<16x128xi32>
    %11 = arith.cmpi eq, %1, %10 : vector<16x128xi32>
    %12 = arith.extui %11 : vector<16x128xi1> to vector<16x128xi32>
    %13 = arith.sitofp %12 : vector<16x128xi32> to vector<16x128xf32>
    %14 = arith.truncf %13 : vector<16x128xf32> to vector<16x128xbf16>
    %15 = arith.addf %4, %14 : vector<16x128xbf16>
    %16 = vector.shape_cast %3 : vector<1x1x128xi32> to vector<1x128xi32>
    %c10_i32 = arith.constant 10 : i32
    %17 = vector.broadcast %c10_i32 : i32 to vector<1x128xi32>
    %18 = arith.shrsi %16, %17 : vector<1x128xi32>
    %c1023_i32_7 = arith.constant 1023 : i32
    %19 = vector.broadcast %c1023_i32_7 : i32 to vector<1x128xi32>
    %20 = arith.andi %18, %19 : vector<1x128xi32>
    %21 = vector.broadcast %20 : vector<1x128xi32> to vector<16x128xi32>
    %22 = arith.cmpi eq, %1, %21 : vector<16x128xi32>
    %23 = arith.extui %22 : vector<16x128xi1> to vector<16x128xi32>
    %24 = arith.sitofp %23 : vector<16x128xi32> to vector<16x128xf32>
    %25 = arith.truncf %24 : vector<16x128xf32> to vector<16x128xbf16>
    %26 = arith.addf %15, %25 : vector<16x128xbf16>
    %27 = vector.shape_cast %3 : vector<1x1x128xi32> to vector<1x128xi32>
    %c20_i32 = arith.constant 20 : i32
    %28 = vector.broadcast %c20_i32 : i32 to vector<1x128xi32>
    %29 = arith.shrsi %27, %28 : vector<1x128xi32>
    %c1023_i32_8 = arith.constant 1023 : i32
    %30 = vector.broadcast %c1023_i32_8 : i32 to vector<1x128xi32>
    %31 = arith.andi %29, %30 : vector<1x128xi32>
    %32 = vector.broadcast %31 : vector<1x128xi32> to vector<16x128xi32>
    %33 = arith.cmpi eq, %1, %32 : vector<16x128xi32>
    %34 = arith.extui %33 : vector<16x128xi1> to vector<16x128xi32>
    %35 = arith.sitofp %34 : vector<16x128xi32> to vector<16x128xf32>
    %36 = arith.truncf %35 : vector<16x128xf32> to vector<16x128xbf16>
    %37 = arith.addf %26, %36 : vector<16x128xbf16>
    %cst_9 = arith.constant dense<0.000000e+00> : vector<8x128xf32>
    %38 = tpu.matmul %0, %37, %cst_9 {dimension_numbers = #tpu.dot_dimension_numbers<[1], [0], [0], [1], [0, 0, 1, 1], [], []>} : vector<8x16xbf16>, vector<16x128xbf16>, vector<8x128xf32> -> vector<8x128xf32>
    %39 = vector.shape_cast %2 : vector<1x1x128xf32> to vector<1x128xf32>
    %cst_10 = arith.constant 2.000000e+00 : f32
    %40 = vector.broadcast %cst_10 : f32 to vector<1x128xf32>
    %41 = arith.mulf %40, %39 : vector<1x128xf32>
    %42 = vector.broadcast %41 : vector<1x128xf32> to vector<8x128xf32>
    %43 = arith.addf %42, %38 : vector<8x128xf32>
    %c0_11 = arith.constant 0 : index
    %c0_12 = arith.constant 0 : index
    %c0_13 = arith.constant 0 : index
    %44 = vector.load %arg5[%c0_11, %c0_12, %c0_13] : memref<1x8x128xf32, #tpu.memory_space<vmem>>, vector<1x8x128xf32>
    %45 = vector.shape_cast %44 : vector<1x8x128xf32> to vector<8x128xf32>
    %46 = vector.shape_cast %43 : vector<8x128xf32> to vector<1x8x128xf32>
    tpu.vector_store %arg5[%c0_11, %c0_12, %c0_13], %46 {strides = array<i32>} : memref<1x8x128xf32, #tpu.memory_space<vmem>>, vector<1x8x128xf32>,
    return
  }
  func.func @transform_0(%arg0: i32, %arg1: i32) -> (i32, i32, i32) {
    %c0_i32 = arith.constant 0 : i32
    %c0_i32_0 = arith.constant 0 : i32
    return %arg0, %c0_i32, %arg1 : i32, i32, i32
  }
  func.func @transform_1(%arg0: i32, %arg1: i32) -> (i32, i32, i32) {
    %c0_i32 = arith.constant 0 : i32
    %c0_i32_0 = arith.constant 0 : i32
    return %arg0, %c0_i32, %arg1 : i32, i32, i32
  }
  func.func @transform_2(%arg0: i32, %arg1: i32) -> (i32, i32) {
    %c0_i32 = arith.constant 0 : i32
    %c0_i32_0 = arith.constant 0 : i32
    %c0_i32_1 = arith.constant 0 : i32
    return %c0_i32, %c0_i32_0 : i32, i32
  }
  func.func @transform_3(%arg0: i32, %arg1: i32) -> (i32, i32, i32) {
    %c0_i32 = arith.constant 0 : i32
    %c0_i32_0 = arith.constant 0 : i32
    return %arg0, %c0_i32, %arg1 : i32, i32, i32
  }
}

</mosaic_0001>

<llo_original>
// kernel: tpu_custom_call.1
$region0: #{tpu_custom_call.1}
  #allocation0 [shape = 'u32[]', space=smem, size = 0x4, offset = 0x4, fixed_abs, tag = 'smem constant byte address 0x4 - core index']
  #allocation1 [shape = 'u32[72,128]{1,0:T(1,128)}', space=vmem, size = 0x9000, scoped, tag = 'internal scratch']
  %s0 = inlined_call_operand.hbm [shape: f32[2,1,128], index: 0, kind: input, shape index: {}]
  %s1 = inlined_call_operand.hbm [shape: s32[2,1,128], index: 1, kind: input, shape index: {}]
  %s2 = inlined_call_operand.hbm [shape: bf16[8,16], index: 2, kind: input, shape index: {}]
  %s3 = inlined_call_operand.hbm [shape: f32[2,8,128], index: 3, kind: output, shape index: {}]
  %s4 = sld [smem:[#allocation0]]
  $region57: #{tpu_custom_call.1} parent=0
    _
  %s6 = ssub.s32 1, %s4
  %s7 = scalar_select 0, %s6, %s4
  $region1: #{tpu_custom_call.1} parent=0
    #allocation2 [shape = 'u8[1024]{0}', space=vmem, size = 0x400, scoped, tag = 'input window, operand 0']
    #allocation3 [shape = 's32[2]{0}', space=sflag, size = 0x8, scoped, tag = 'scoped memory for tpu_custom_call.1']
    #allocation4 [shape = 's32[2]{0}', space=sflag, size = 0x8, scoped, tag = 'scoped memory for tpu_custom_call.1']
    #allocation5 [shape = 'u8[1024]{0}', space=vmem, size = 0x400, scoped, tag = 'input window, operand 1']
    #allocation6 [shape = 's32[2]{0}', space=sflag, size = 0x8, scoped, tag = 'scoped memory for tpu_custom_call.1']
    #allocation7 [shape = 'u8[2048]{0}', space=vmem, size = 0x800, scoped, tag = 'input window, operand 2, single buffered']
    #allocation8 [shape = 'u8[8192]{0}', space=vmem, size = 0x2000, scoped, tag = 'output window, operand 0']
    %8 = vsyncpa [#allocation3], 0
    %s9 = scalar_lea.sflag [#allocation3], 1
    %10 = vsyncpa %s9, 0
    %11 = vsyncpa [#allocation6], 0
    %s12 = scalar_lea.sflag [#allocation6], 1
    %13 = vsyncpa %s12, 0
    %14 = vsyncpa [#allocation4], 0
    %s15 = scalar_lea.sflag [#allocation4], 1
    %16 = vsyncpa %s15, 0
    loop: start=0, step=1, limit=4
    $region2: #{tpu_custom_call.1} parent=1 // loop_pre_header
      _
    $region3: #{tpu_custom_call.1} parent=1 // loop_header
      %s18 = sphi 0, %s22
      %p19 = scmp.ge.s32.totalorder %s18, 4
      %s25 = sphi 0, %s37
      %s26 = sphi 0, %s33
      %s27 = sphi 0, %s25
      %s28 = sphi 0, %s26
      %s29 = sphi 0, %s27
      %s30 = sphi 0, %s28
      %s42 = sphi 0, %s44
      %s45 = sphi 0, %s42
      %s46 = sphi 0, %s45
      %s62 = sphi 0, %s46
      %s70 = sphi 0, %s72
      %s73 = sphi 0, %s70
      %s74 = sphi 0, %s73
      %s90 = sphi 0, %s74
      %s94 = sphi 0, %s94
      %s96 = sphi 0, %s94
      %s97 = sphi 0, %s96
      %s111 = sphi 0, %s97
      %s119 = sphi 0, %s121
      %s122 = sphi 0, %s119
      %s123 = sphi 0, %s122
      %s139 = sphi 0, %s123
    $region4: #{tpu_custom_call.1} parent=1 // loop_header_branch
      %21 = sbr.rel (%p19) target = $region8
    $region5: #{tpu_custom_call.1} parent=1 // loop_body
      %s23 = ssub.s32 %s18, 1
      %s24 = ssub.s32 %s18, 2
      %s31 = sadd.s32 1, %s26
      %p32 = scmp.ge.s32.totalorder %s31, 1
      %s33 = scalar_select %p32, 0, %s31
      %s34 = sadd.s32 1, %s25
      %s35 = scalar_select %p32, %s34, %s25
      %p36 = scmp.ge.s32.totalorder %s35, 2
      %s37 = scalar_select %p36, 0, %s35
      %s38 = ssub.s32 %s25, %s37
      %s39 = ssub.s32 %s26, %s33
      %s40 = sor.u32 %s38, %s39
      %p41 = scmp.eq.s32.totalorder %s40, 0
      %s43 = sadd.s32 %s42, 1
      %s44 = scalar_select %p41, %s42, %s43
      %p47 = pneg %p41
      %p48 = scmp.eq.s32.totalorder %s18, 1
      %p49 = por %p47, %p48
      %p50 = scmp.ne.s32.totalorder %s42, %s45
      %p51 = scmp.eq.s32.totalorder %s18, 0
      %p52 = por %p50, %p51
      %p53 = scmp.ne.s32.totalorder %s42, %s45
      %p54 = scmp.eq.s32.totalorder %s23, 1
      %p55 = por %p53, %p54
      %p56 = scmp.ne.s32.totalorder %s45, %s46
      %p57 = scmp.eq.s32.totalorder %s23, 0
      %p58 = por %p56, %p57
      %p59 = scmp.ne.s32.totalorder %s45, %s46
      %p60 = scmp.eq.s32.totalorder %s24, 1
      %p61 = por %p59, %p60
      %p63 = scmp.ne.s32.totalorder %s46, %s62
      %p64 = scmp.eq.s32.totalorder %s24, 0
      %p65 = por %p63, %p64
      %s66 = ssub.s32 %s25, %s37
      %s67 = ssub.s32 %s26, %s33
      %s68 = sor.u32 %s66, %s67
      %p69 = scmp.eq.s32.totalorder %s68, 0
      %s71 = sadd.s32 %s70, 1
      %s72 = scalar_select %p69, %s70, %s71
      %p75 = pneg %p69
      %p76 = scmp.eq.s32.totalorder %s18, 1
      %p77 = por %p75, %p76
      %p78 = scmp.ne.s32.totalorder %s70, %s73
      %p79 = scmp.eq.s32.totalorder %s18, 0
      %p80 = por %p78, %p79
      %p81 = scmp.ne.s32.totalorder %s70, %s73
      %p82 = scmp.eq.s32.totalorder %s23, 1
      %p83 = por %p81, %p82
      %p84 = scmp.ne.s32.totalorder %s73, %s74
      %p85 = scmp.eq.s32.totalorder %s23, 0
      %p86 = por %p84, %p85
      %p87 = scmp.ne.s32.totalorder %s73, %s74
      %p88 = scmp.eq.s32.totalorder %s24, 1
      %p89 = por %p87, %p88
      %p91 = scmp.ne.s32.totalorder %s74, %s90
      %p92 = scmp.eq.s32.totalorder %s24, 0
      %p93 = por %p91, %p92
      %s95 = sadd.s32 %s94, 1
      %p98 = scmp.eq.s32.totalorder %s18, 1
      %p99 = scmp.ne.s32.totalorder %s94, %s96
      %p100 = scmp.eq.s32.totalorder %s18, 0
      %p101 = por %p99, %p100
      %p102 = scmp.ne.s32.totalorder %s94, %s96
      %p103 = scmp.eq.s32.totalorder %s23, 1
      %p104 = por %p102, %p103
      %p105 = scmp.ne.s32.totalorder %s96, %s97
      %p106 = scmp.eq.s32.totalorder %s23, 0
      %p107 = por %p105, %p106
      %p108 = scmp.ne.s32.totalorder %s96, %s97
      %p109 = scmp.eq.s32.totalorder %s24, 1
      %p110 = por %p108, %p109
      %p112 = scmp.ne.s32.totalorder %s97, %s111
      %p113 = scmp.eq.s32.totalorder %s24, 0
      %p114 = por %p112, %p113
      %s115 = ssub.s32 %s25, %s37
      %s116 = ssub.s32 %s26, %s33
      %s117 = sor.u32 %s115, %s116
      %p118 = scmp.eq.s32.totalorder %s117, 0
      %s120 = sadd.s32 %s119, 1
      %s121 = scalar_select %p118, %s119, %s120
      %p124 = pneg %p118
      %p125 = scmp.eq.s32.totalorder %s18, 1
      %p126 = por %p124, %p125
      %p127 = scmp.ne.s32.totalorder %s119, %s122
      %p128 = scmp.eq.s32.totalorder %s18, 0
      %p129 = por %p127, %p128
      %p130 = scmp.ne.s32.totalorder %s119, %s122
      %p131 = scmp.eq.s32.totalorder %s23, 1
      %p132 = por %p130, %p131
      %p133 = scmp.ne.s32.totalorder %s122, %s123
      %p134 = scmp.eq.s32.totalorder %s23, 0
      %p135 = por %p133, %p134
      %p136 = scmp.ne.s32.totalorder %s122, %s123
      %p137 = scmp.eq.s32.totalorder %s24, 1
      %p138 = por %p136, %p137
      %p140 = scmp.ne.s32.totalorder %s123, %s139
      %p141 = scmp.eq.s32.totalorder %s24, 0
      %p142 = por %p140, %p141
      %p143 = scmp.le.s32.totalorder 1, %s18
      %p144 = scmp.lt.s32.totalorder %s18, 3
      %p145 = pnand %p143, %p144
      %p146 = pneg %p145
      // Predicated region
      $region9: #{tpu_custom_call.1} parent=5 // pred_check
        _
      $region10: #{tpu_custom_call.1} parent=5 // pred_check_branch
        %148 = sbr.rel (%p145) target = $region12
      $region11: #{tpu_custom_call.1} parent=5 // pred_region
        %s149 = ssub.s32 %s18, 1
        // Predicated region
        $region13: #{tpu_custom_call.1} parent=11 // pred_check
          %p150 = pneg %p107
        $region14: #{tpu_custom_call.1} parent=11 // pred_check_branch
          %152 = sbr.rel (%p150) target = $region16
        $region15: #{tpu_custom_call.1} parent=11 // pred_region
          %154 = vsyncadd [#allocation6], 0
          %s156 = sshll.u32 %s2, 4
          %s157 = int_to_ptr.hbm [resolvable:$true] %s156
          %s158 = sshll.u32 [#allocation7], 4
          %s159 = int_to_ptr.vmem [resolvable:$true] %s158
          %161 = dma.hbm_to_vmem [thread:$0]  %s157, 64, %s159, [#allocation6]
        $region16: #{tpu_custom_call.1} parent=11 // pred_fallthru
          _
      $region12: #{tpu_custom_call.1} parent=5 // pred_fallthru
        _
      %p162 = scmp.lt.s32.totalorder %s18, 2
      // Predicated region
      $region17: #{tpu_custom_call.1} parent=5 // pred_check
        %p163 = pneg %p162
      $region18: #{tpu_custom_call.1} parent=5 // pred_check_branch
        %165 = sbr.rel (%p163) target = $region20
      $region19: #{tpu_custom_call.1} parent=5 // pred_region
        // Predicated region
        $region21: #{tpu_custom_call.1} parent=19 // pred_check
          %p166 = pneg %p52
        $region22: #{tpu_custom_call.1} parent=19 // pred_check_branch
          %168 = sbr.rel (%p166) target = $region24
        $region23: #{tpu_custom_call.1} parent=19 // pred_region
          %s169 = sand.u32 %s42, 1
          %s170 = scalar_lea.sflag [#allocation3], %s169
          %s171 = sand.u32 %s42, 1
          %s172 = scalar_lea.vmem [#allocation2], %s171
          %174 = vsyncadd %s170, 0
          %s175 = sadd.s32 %s26, %s25
          %s176 = scalar_lea.hbm %s0, %s175
          %s178 = sshll.u32 %s176, 4
          %s179 = int_to_ptr.hbm [resolvable:$true] %s178
          %s180 = sshll.u32 %s172, 4
          %s181 = int_to_ptr.vmem [resolvable:$true] %s180
          %183 = dma.hbm_to_vmem [thread:$0]  %s179, 16, %s181, %s170
        $region24: #{tpu_custom_call.1} parent=19 // pred_fallthru
          _
        // Predicated region
        $region25: #{tpu_custom_call.1} parent=19 // pred_check
          %p184 = pneg %p80
        $region26: #{tpu_custom_call.1} parent=19 // pred_check_branch
          %186 = sbr.rel (%p184) target = $region28
        $region27: #{tpu_custom_call.1} parent=19 // pred_region
          %s187 = sand.u32 %s18, 1
          %s188 = scalar_lea.sflag [#allocation6], %s187
          %s189 = sand.u32 %s70, 1
          %s190 = scalar_lea.vmem [#allocation5], %s189
          %192 = vsyncadd %s188, 0
          %s193 = sadd.s32 %s26, %s25
          %s194 = scalar_lea.hbm %s1, %s193
          %s196 = sshll.u32 %s194, 4
          %s197 = int_to_ptr.hbm [resolvable:$true] %s196
          %s198 = sshll.u32 %s190, 4
          %s199 = int_to_ptr.vmem [resolvable:$true] %s198
          %201 = dma.hbm_to_vmem [thread:$0]  %s197, 16, %s199, %s188
        $region28: #{tpu_custom_call.1} parent=19 // pred_fallthru
          _
      $region20: #{tpu_custom_call.1} parent=5 // pred_fallthru
        _
      %p202 = scmp.le.s32.totalorder 1, %s18
      %p203 = scmp.lt.s32.totalorder %s18, 3
      %p204 = pnand %p202, %p203
      %p205 = pneg %p204
      // Predicated region
      $region29: #{tpu_custom_call.1} parent=5 // pred_check
        _
      $region30: #{tpu_custom_call.1} parent=5 // pred_check_branch
        %207 = sbr.rel (%p204) target = $region32
      $region31: #{tpu_custom_call.1} parent=5 // pred_region
        %s208 = ssub.s32 %s18, 1
        %s209 = sand.u32 %s45, 1
        %s210 = scalar_lea.sflag [#allocation3], %s209
        %s211 = sand.u32 %s45, 1
        %s212 = scalar_lea.vmem [#allocation2], %s211
        // Predicated region
        $region33: #{tpu_custom_call.1} parent=31 // pred_check
          %p213 = pneg %p58
        $region34: #{tpu_custom_call.1} parent=31 // pred_check_branch
          %215 = sbr.rel (%p213) target = $region36
        $region35: #{tpu_custom_call.1} parent=31 // pred_region
          %217 = dma.done %s210, 16
        $region36: #{tpu_custom_call.1} parent=31 // pred_fallthru
          _
        %s218 = sand.u32 %s23, 1
        %s219 = scalar_lea.sflag [#allocation6], %s218
        %s220 = sand.u32 %s73, 1
        %s221 = scalar_lea.vmem [#allocation5], %s220
        // Predicated region
        $region37: #{tpu_custom_call.1} parent=31 // pred_check
          %p222 = pneg %p86
        $region38: #{tpu_custom_call.1} parent=31 // pred_check_branch
          %224 = sbr.rel (%p222) target = $region40
        $region39: #{tpu_custom_call.1} parent=31 // pred_region
          %226 = dma.done %s219, 16
        $region40: #{tpu_custom_call.1} parent=31 // pred_fallthru
          _
        // Predicated region
        $region41: #{tpu_custom_call.1} parent=31 // pred_check
          %p227 = pneg %p107
        $region42: #{tpu_custom_call.1} parent=31 // pred_check_branch
          %229 = sbr.rel (%p227) target = $region44
        $region43: #{tpu_custom_call.1} parent=31 // pred_region
          %231 = dma.done [#allocation6], 64
        $region44: #{tpu_custom_call.1} parent=31 // pred_fallthru
          _
        %s232 = sand.u32 %s45, 1
        %s233 = scalar_lea.sflag [#allocation3], %s232
        %s234 = sand.u32 %s45, 1
        %s235 = scalar_lea.vmem [#allocation2], %s234
        %p236 = pneg %p58
        %p237 = pneg %p55
        %s238 = sand.u32 %s23, 1
        %s239 = scalar_lea.sflag [#allocation6], %s238
        %s240 = sand.u32 %s73, 1
        %s241 = scalar_lea.vmem [#allocation5], %s240
        %p242 = pneg %p86
        %p243 = pneg %p83
        %p244 = pneg %p107
        %p245 = pneg %p104
        %p246 = pneg %p135
        %p247 = pneg %p132
        %s248 = sand.u32 %s122, 1
        %s249 = scalar_lea.sflag [#allocation4], %s248
        %s250 = sand.u32 %s122, 1
        %s251 = smul.addr %s250, 8
        %s252 = scalar_lea.vmem [#allocation8], %s251
        %v254 = vld [vmem:[#allocation7] sm:$0xf]
        %v255 = vlaneseq
        %v256 = vshrl.u32 %v255, 7
        %v257 = vadd.s32 %v256, 8
        %v258 = vld [vmem:[%s212] sm:$0x1]
        %v259 = vld [vmem:[%s221] sm:$0x1]
        %v260 = vand.u32 %v259, 1023
        %v261 = vperm.slane %v260, 0
        %vm262 = vcmp.eq.s32.totalorder %v256, %v261
        %vm263 = vcmp.eq.s32.totalorder %v257, %v261
        %v264 = vsel %vm262, 1, 0
        %v265 = vsel %vm263, 1, 0
        %v266 = vcvt.s32.f32 %v264
        %v267 = vcvt.s32.f32 %v265
        %v268 = vpack.c.bf16 %v266, %v266
        %v269 = vpack.c.bf16 %v267, %v267
        %v270 = vunpack.c.l.bf16 %v268
        %v271 = vunpack.c.l.bf16 %v269
        %v272 = vadd.f32 %v270, 0.0
        %v273 = vadd.f32 %v271, 0.0
        %v274 = vpack.c.bf16 %v272, %v272
        %v275 = vpack.c.bf16 %v273, %v273
        %v276 = vshra.s32 %v259, 10
        %v277 = vand.u32 %v276, 1023
        %v278 = vperm.slane %v277, 0
        %vm279 = vcmp.eq.s32.totalorder %v256, %v278
        %vm280 = vcmp.eq.s32.totalorder %v257, %v278
        %v281 = vsel %vm279, 1, 0
        %v282 = vsel %vm280, 1, 0
        %v283 = vcvt.s32.f32 %v281
        %v284 = vcvt.s32.f32 %v282
        %v285 = vpack.c.bf16 %v283, %v283
        %v286 = vpack.c.bf16 %v284, %v284
        %v287 = vunpack.c.l.bf16 %v274
        %v288 = vunpack.c.l.bf16 %v275
        %v289 = vunpack.c.l.bf16 %v285
        %v290 = vunpack.c.l.bf16 %v286
        %v291 = vadd.f32 %v287, %v289
        %v292 = vadd.f32 %v288, %v290
        %v293 = vpack.c.bf16 %v291, %v291
        %v294 = vpack.c.bf16 %v292, %v292
        %v295 = vshra.s32 %v259, 20
        %v296 = vand.u32 %v295, 1023
        %v297 = vperm.slane %v296, 0
        %vm298 = vcmp.eq.s32.totalorder %v256, %v297
        %vm299 = vcmp.eq.s32.totalorder %v257, %v297
        %v300 = vsel %vm298, 1, 0
        %v301 = vsel %vm299, 1, 0
        %v302 = vcvt.s32.f32 %v300
        %v303 = vcvt.s32.f32 %v301
        %v304 = vpack.c.bf16 %v302, %v302
        %v305 = vpack.c.bf16 %v303, %v303
        %v306 = vunpack.c.l.bf16 %v293
        %v307 = vunpack.c.l.bf16 %v294
        %v308 = vunpack.c.l.bf16 %v304
        %v309 = vunpack.c.l.bf16 %v305
        %v310 = vadd.f32 %v306, %v308
        %v311 = vadd.f32 %v307, %v309
        %v312 = vpack.c.bf16 %v311, %v310
        %vm313 = vcmask 130048
        %v315 = vsel %vm313, %v254, 0
        %317 = vmatpush.bf16.msra.mxu0 0
        %318 = vmatpush.bf16.msra.mxu0 0
        %319 = vmatpush.bf16.msra.mxu0 0
        %320 = vmatpush.bf16.msra.mxu0 0
        %321 = vmatpush.bf16.msra.mxu0 0
        %322 = vmatpush.bf16.msra.mxu0 0
        %323 = vmatpush.bf16.msra.mxu0 0
        %324 = vmatpush.bf16.msra.mxu0 %v312
        %325 = vmatmul.bf16.gmra.mxu0 %v315
        %v326 = vpop.f32.mrf.mxu0
        %v327 = vadd.f32 0.0, %v326
        %v328 = vpop.f32.mrf.mxu0
        %329 = vdwg.mxu0
        %v330 = vmul.f32 %v258, 2.0
        %v332 = vperm.slane %v330, 0
        %v334 = vadd.f32 %v332, %v327
        %335 = vst [vmem:[%s252] sm:$0xff] %v334
        %s336 = sand.u32 %s122, 1
        %s337 = scalar_lea.sflag [#allocation4], %s336
        %s338 = sand.u32 %s122, 1
        %s339 = smul.addr %s338, 8
        %s340 = scalar_lea.vmem [#allocation8], %s339
        // Predicated region
        $region45: #{tpu_custom_call.1} parent=31 // pred_check
          %p341 = pneg %p132
        $region46: #{tpu_custom_call.1} parent=31 // pred_check_branch
          %343 = sbr.rel (%p341) target = $region48
        $region47: #{tpu_custom_call.1} parent=31 // pred_region
          %345 = vsyncadd %s337, 0
          %s346 = sadd.s32 %s28, %s27
          %s347 = smul.addr %s346, 8
          %s348 = scalar_lea.hbm %s3, %s347
          %s350 = sshll.u32 %s340, 4
          %s351 = int_to_ptr.vmem [resolvable:$true] %s350
          %s352 = sshll.u32 %s348, 4
          %s353 = int_to_ptr.hbm [resolvable:$true] %s352
          %355 = dma.vmem_to_hbm [thread:$0]  %s351, 128, %s353, %s337
        $region48: #{tpu_custom_call.1} parent=31 // pred_fallthru
          _
      $region32: #{tpu_custom_call.1} parent=5 // pred_fallthru
        _
      %p356 = scmp.le.s32.totalorder 2, %s18
      // Predicated region
      $region49: #{tpu_custom_call.1} parent=5 // pred_check
        %p357 = pneg %p356
      $region50: #{tpu_custom_call.1} parent=5 // pred_check_branch
        %359 = sbr.rel (%p357) target = $region52
      $region51: #{tpu_custom_call.1} parent=5 // pred_region
        %s360 = ssub.s32 %s18, 2
        // Predicated region
        $region53: #{tpu_custom_call.1} parent=51 // pred_check
          %p361 = pneg %p138
        $region54: #{tpu_custom_call.1} parent=51 // pred_check_branch
          %363 = sbr.rel (%p361) target = $region56
        $region55: #{tpu_custom_call.1} parent=51 // pred_region
          %s364 = sand.u32 %s123, 1
          %s365 = scalar_lea.sflag [#allocation4], %s364
          %s366 = sand.u32 %s123, 1
          %s367 = smul.addr %s366, 8
          %s368 = scalar_lea.vmem [#allocation8], %s367
          %370 = dma.done %s365, 128
        $region56: #{tpu_custom_call.1} parent=51 // pred_fallthru
          _
      $region52: #{tpu_custom_call.1} parent=5 // pred_fallthru
        _
    $region6: #{tpu_custom_call.1} parent=1 // loop_footer
      %s22 = sadd.s32 1, %s18
    $region7: #{tpu_custom_call.1} parent=1 // loop_footer_branch
      %17 = sbr.rel target = $region3
    $region8: #{tpu_custom_call.1} parent=1 // loop_exit
      _
    %371 = vsyncpa [#allocation3], 1
    %s372 = scalar_lea.sflag [#allocation3], 1
    %373 = vsyncpa %s372, 1
    %374 = vsyncpa [#allocation6], 1
    %s375 = scalar_lea.sflag [#allocation6], 1
    %376 = vsyncpa %s375, 1
    %377 = vsyncpa [#allocation4], 1
    %s378 = scalar_lea.sflag [#allocation4], 1
    %379 = vsyncpa %s378, 1

</llo_original>
